<compile_context>
chip_gen: v7x
topology: tpu7x:2x2x1
jax: 0.10.0
libtpu: 0.0.40
codegen_flags: <defaults>
</compile_context>

<pallas_src>
import jax
import jax.numpy as jnp
from jax.experimental import pallas as pl
from jax.experimental.pallas import tpu as pltpu


_LN_EPS = 1e-5      # nn.LayerNorm default eps
_COS_EPS = 1e-8     # F.cosine_similarity default eps
_SCORE_EPS = 1e-8   # self.eps


def _round_up(x, m):
    return (x + m - 1) // m * m


def _map_function_ref(z, params):
    """Plain-JAX reference of map_function (f32): Linear -> LN -> ReLU -> Linear.
    Used for the one-time anchor precompute and the correctness check."""
    h = z @ params["w1"] + params["b1"]
    mu = h.mean(-1, keepdims=True)
    var = ((h - mu) ** 2).mean(-1, keepdims=True)
    h = (h - mu) / jnp.sqrt(var + _LN_EPS) * params["ln_g"] + params["ln_b"]
    h = jnp.maximum(h, 0.0)
    return h @ params["w2"] + params["b2"]


# -----------------------------------------------------------------------------
# ONE-TIME setup (amortized across forwards): fused / bf16 weights and the
# mapped anchors folded into the second matmul.
# -----------------------------------------------------------------------------
def prepare_cl_head(params, emo_anchor):
    am = _map_function_ref(emo_anchor.astype(jnp.float32), params)       # (A, L)
    A, L = am.shape
    D = params["w1"].shape[0]
    C = params["wp"].shape[1]
    wcat1 = jnp.concatenate([params["w1"], params["wp"]], axis=1).astype(jnp.bfloat16)
    bcat1 = jnp.concatenate([params["b1"], params["bp"]], axis=1).astype(jnp.float32)
    # fold the cosine dot: xm @ am.T == hn @ (W2 @ am.T) + b2 @ am.T
    w2cat = jnp.concatenate([params["w2"], params["w2"] @ am.T], axis=1).astype(jnp.bfloat16)
    b2cat = jnp.concatenate([params["b2"], params["b2"] @ am.T], axis=1).astype(jnp.float32)
    asq = jnp.sum(am * am, axis=-1, keepdims=True).reshape(1, A)          # (1, A)
    return {
        "wcat1": wcat1, "bcat1": bcat1,
        "ln_g": params["ln_g"].astype(jnp.float32),
        "ln_b": params["ln_b"].astype(jnp.float32),
        "w2cat": w2cat, "b2cat": b2cat, "asq": asq,
        "D": D, "C": C, "L": L, "A": A,
    }


# -----------------------------------------------------------------------------
# Fused head kernel (gather + predictor + mapping MLP + cosine scores)
# -----------------------------------------------------------------------------
def _make_head_kernel(TB, B_real, D, C, L, A, PADW, want_mask_out):

    def kernel(pos_ref, enc_hbm, wcat_ref, bcat_ref, g_ref, be_ref,
               w2cat_ref, b2cat_ref, asq_ref, *refs):
        if want_mask_out:
            slab_ref, mask_out_ref, xbuf, sem = refs
        else:
            slab_ref, xbuf, sem = refs
            mask_out_ref = None

        base = pl.program_id(0) * TB

        # ---- DMA row-gather: enc[b, pos[b], :] -> xbuf[r, :] -----------------
        # (scalar-prefetched mask_pos; encoder stays in HBM; only B*D floats
        #  move instead of B*S*D)
        @pl.loop(0, TB)
        def _(r):
            b = jnp.minimum(base + r, B_real - 1)      # clamp padded rows
            p = pos_ref[b]
            pltpu.make_async_copy(enc_hbm.at[b, pl.ds(p, 1), :],
                                  xbuf.at[pl.ds(r, 1), :], sem).start()

        @pl.loop(0, TB)
        def _(r):
            # identical-size descriptor per wait; consumes one gather signal
            pltpu.make_async_copy(enc_hbm.at[0, pl.ds(0, 1), :],
                                  xbuf.at[pl.ds(0, 1), :], sem).wait()

        x = xbuf[...]                                                   # (TB, D) f32
        if want_mask_out:
            mask_out_ref[...] = x

        # ---- MXU pass 1: Linear(D->D) fused with predictor Linear(D->C) ------
        h_all = jnp.dot(x.astype(jnp.bfloat16), wcat_ref[...],
                        preferred_element_type=jnp.float32) + bcat_ref[...]
        h = h_all[:, :D]
        feat = h_all[:, D:D + C]          # predictor logits (dropout = identity)

        # ---- LayerNorm (one-pass stats) + ReLU, f32 ---------------------------
        mu = jnp.mean(h, axis=-1, keepdims=True)
        var = jnp.maximum(jnp.mean(h * h, axis=-1, keepdims=True) - mu * mu, 0.0)
        hn = (h - mu) * jax.lax.rsqrt(var + _LN_EPS) * g_ref[...] + be_ref[...]
        hn = jnp.maximum(hn, 0.0)

        # ---- MXU pass 2: Linear(D->L) fused with anchor dots (D->A) ----------
        h2 = jnp.dot(hn.astype(jnp.bfloat16), w2cat_ref[...],
                     preferred_element_type=jnp.float32) + b2cat_ref[...]
        xm = h2[:, :L]
        dots = h2[:, L:L + A]

        # ---- cosine scores (torch semantics; rsqrt on EUP) --------------------
        xsq = jnp.sum(xm * xm, axis=-1, keepdims=True)
        inv = jax.lax.rsqrt(jnp.maximum(xsq * asq_ref[...], _COS_EPS * _COS_EPS))
        scores = (1.0 + dots * inv) * 0.5 + _SCORE_EPS

        # ---- build packed row in registers, ONE full-width store -------------
        pad = PADW - (L + C + A)
        parts = [xm, feat, scores]
        if pad:
            parts.append(jnp.zeros((TB, pad), jnp.float32))
        slab_ref[...] = jnp.concatenate(parts, axis=1)

    return kernel


def cl_head(utterance_encoded, mask_pos, head, *, block_b=512,
            return_mask_output=True):
    B, S, D = utterance_encoded.shape
    C, L, A = head["C"], head["L"], head["A"]
    assert D == head["D"]

    TB = min(_round_up(B, 8), block_b)
    Bp = _round_up(B, TB)
    n_b = Bp // TB
    PADW = _round_up(L + C + A, 128)

    pos = mask_pos.astype(jnp.int32)
    if Bp != B:
        pos = jnp.pad(pos, (0, Bp - B))

    out_shapes = [jax.ShapeDtypeStruct((Bp, PADW), jnp.float32)]
    out_specs = [pl.BlockSpec((TB, PADW), lambda i, pos_ref: (i, 0))]
    if return_mask_output:
        out_shapes.append(jax.ShapeDtypeStruct((Bp, D), jnp.float32))
        out_specs.append(pl.BlockSpec((TB, D), lambda i, pos_ref: (i, 0)))

    full2 = lambda shp: pl.BlockSpec(shp, lambda i, pos_ref: (0, 0))

    # Explicit scoped-VMEM budget (tiny after the DMA-gather fix):
    # double-buffered weight blocks + outputs + gather scratch + headroom.
    wbytes = (D * (D + C) + D * (L + A)) * 2 + ((D + C) + (L + A) + 2 * D + A) * 4
    obytes = TB * PADW * 4 + (TB * D * 4 if return_mask_output else 0)
    vmem_limit = min(int(2 * wbytes + 2 * obytes + TB * D * 4 + (16 << 20)), 96 << 20)

    kernel = _make_head_kernel(TB, B, D, C, L, A, PADW, return_mask_output)

    outs = pl.pallas_call(
        kernel,
        out_shape=tuple(out_shapes),
        grid_spec=pltpu.PrefetchScalarGridSpec(
            num_scalar_prefetch=1,                    # mask_pos -> SMEM
            grid=(n_b,),
            in_specs=[
                pl.BlockSpec(memory_space=pl.ANY),    # encoder stays in HBM
                full2((D, D + C)),                    # [W1 | Wp]        bf16
                full2((1, D + C)),                    # [b1 | bp]
                full2((1, D)),                        # LN gamma
                full2((1, D)),                        # LN beta
                full2((D, L + A)),                    # [W2 | W2@am.T]   bf16
                full2((1, L + A)),                    # [b2 | b2@am.T]
                full2((1, A)),                        # anchor ||.||^2
            ],
            out_specs=tuple(out_specs),
            scratch_shapes=[
                pltpu.VMEM((TB, D), jnp.float32),     # gathered mask rows
                pltpu.SemaphoreType.DMA,              # gather DMA semaphore
            ],
        ),
        compiler_params=pltpu.CompilerParams(
            dimension_semantics=("parallel",),        # TODO(synk): try CORE_PARALLEL on v7x
            vmem_limit_bytes=vmem_limit),
    )(pos, utterance_encoded, head["wcat1"], head["bcat1"],
      head["ln_g"], head["ln_b"], head["w2cat"], head["b2cat"], head["asq"])

    slab = outs[0]
    mapped = slab[:B, :L]
    feature = slab[:B, L:L + C]
    scores = slab[:B, L + C:L + C + A]
    mask_out = outs[1][:B] if return_mask_output else None
    return feature, mapped, mask_out, scores


# -----------------------------------------------------------------------------
# Full forward (encoder is a deterministic stand-in, see TODO at top)
# -----------------------------------------------------------------------------
def cl_model_forward(sentences, utterance_encoded, head, mask_value=50264,
                     return_mask_output=False):
    # mask_pos = (sentences == mask_value).long().max(1)[1]  (first occurrence)
    mask_pos = jnp.argmax((sentences == mask_value).astype(jnp.int32),
                          axis=1).astype(jnp.int32)
    feature, mapped, mask_outputs, scores = cl_head(
        utterance_encoded, mask_pos, head, return_mask_output=return_mask_output)
    if return_mask_output:
        return feature, mapped, mask_outputs, scores
    return feature


if __name__ == "__main__":
    # Small shapes consistent with the module's forward.
    B, S, D = 8, 16, 128        # batch, seq len, hidden dim (self.dim)
    L = 64                      # args.mapping_lower_dim
    C = 8                       # n_classes
    A = 6                       # IEMOCAP: 6 emotion anchors
    PAD_VALUE = 1
    MASK_VALUE = 50264

    key = jax.random.PRNGKey(0)
    ks = jax.random.split(key, 12)

    params = {
        "w1":   jax.random.normal(ks[0], (D, D), jnp.float32) * 0.02,
        "b1":   jnp.zeros((1, D), jnp.float32),
        "ln_g": jnp.ones((1, D), jnp.float32),
        "ln_b": jnp.zeros((1, D), jnp.float32),
        "w2":   jax.random.normal(ks[1], (D, L), jnp.float32) * 0.02,
        "b2":   jnp.zeros((1, L), jnp.float32),
        "wp":   jax.random.normal(ks[2], (D, C), jnp.float32) * 0.02,
        "bp":   jnp.zeros((1, C), jnp.float32),
    }

    sentences = jax.random.randint(ks[3], (B, S), 5, 1000, jnp.int32)
    mask_cols = jax.random.randint(ks[4], (B,), 1, S - 2, jnp.int32)
    sentences = sentences.at[jnp.arange(B), mask_cols].set(MASK_VALUE)
    sentences = sentences.at[:, -1].set(PAD_VALUE)

    # TODO(synk): stand-in for the frozen BERT encoder's last_hidden_state.
    utterance_encoded = jax.random.normal(ks[5], (B, S, D), jnp.float32)
    emo_anchor = jax.random.normal(ks[6], (A, D), jnp.float32)

    # one-time setup (amortized over all subsequent forwards)
    head = prepare_cl_head(params, emo_anchor)

    feature, mapped, mask_outputs, scores = cl_model_forward(
        sentences, utterance_encoded, head,
        mask_value=MASK_VALUE, return_mask_output=True)
    jax.block_until_ready((feature, mapped, mask_outputs, scores))

    # exercise the return_mask_output=False fast path (no mask_out writeback)
    feature_only = cl_model_forward(sentences, utterance_encoded, head,
                                    mask_value=MASK_VALUE, return_mask_output=False)
    jax.block_until_ready(feature_only)

    # Plain-JAX reference (f32 everywhere; kernel matmuls use bf16 MXU operands,
    # so mapped/feature/scores tolerances are loosened accordingly).
    ref_mo = utterance_encoded[jnp.arange(B),
                               jnp.argmax(sentences == MASK_VALUE, axis=1)]
    ref_feat = ref_mo @ params["wp"] + params["bp"]
    ref_map = _map_function_ref(ref_mo, params)
    ref_anc = _map_function_ref(emo_anchor, params)
    xsq = jnp.sum(ref_map * ref_map, axis=-1, keepdims=True)
    asq = jnp.sum(ref_anc * ref_anc, axis=-1, keepdims=True)
    denom = jnp.sqrt(jnp.maximum(xsq * asq.T, _COS_EPS * _COS_EPS))
    ref_scores = (1.0 + (ref_map @ ref_anc.T) / denom) / 2.0 + _SCORE_EPS

    assert jnp.allclose(ref_mo, mask_outputs, atol=1e-6)
    assert jnp.allclose(ref_feat, feature, atol=2e-2, rtol=2e-2)
    assert jnp.allclose(ref_map, mapped, atol=2e-2, rtol=2e-2)
    assert jnp.allclose(ref_scores, scores, atol=2e-2, rtol=2e-2)
    assert jnp.allclose(feature, feature_only, atol=1e-5)

    print("KERNEL_OK")
</pallas_src>

<mosaic_0001>
module attributes {stable_mosaic.version = 11 : i64} {
  func.func @kernel(%arg0: i32, %arg1: memref<8xi32, #tpu.memory_space<smem>>, %arg2: memref<8x16x128xf32, #tpu.memory_space<any>>, %arg3: memref<128x136xbf16, #tpu.memory_space<vmem>>, %arg4: memref<1x136xf32, #tpu.memory_space<vmem>>, %arg5: memref<1x128xf32, #tpu.memory_space<vmem>>, %arg6: memref<1x128xf32, #tpu.memory_space<vmem>>, %arg7: memref<128x70xbf16, #tpu.memory_space<vmem>>, %arg8: memref<1x70xf32, #tpu.memory_space<vmem>>, %arg9: memref<1x6xf32, #tpu.memory_space<vmem>>, %arg10: memref<8x128xf32, #tpu.memory_space<vmem>>, %arg11: memref<8x128xf32, #tpu.memory_space<vmem>>, %arg12: memref<8x128xf32, #tpu.memory_space<vmem>>, %arg13: memref<!tpu.dma_semaphore, #tpu.memory_space<semaphore_mem>>) attributes {dimension_semantics = [#tpu.dimension_semantics<parallel>], iteration_bounds = array<i64: 1>, scalar_prefetch = 1 : i64, scratch_operands = 2 : i64, tpu.core_type = #tpu.core_type<tc>, window_params = [{}, {pipeline_mode = #tpu.pipeline_mode<synchronous>, transform_indices = @transform_1, window_bounds = array<i64: 128, 136>}, {pipeline_mode = #tpu.pipeline_mode<synchronous>, transform_indices = @transform_2, window_bounds = array<i64: 1, 136>}, {pipeline_mode = #tpu.pipeline_mode<synchronous>, transform_indices = @transform_3, window_bounds = array<i64: 1, 128>}, {pipeline_mode = #tpu.pipeline_mode<synchronous>, transform_indices = @transform_4, window_bounds = array<i64: 1, 128>}, {pipeline_mode = #tpu.pipeline_mode<synchronous>, transform_indices = @transform_5, window_bounds = array<i64: 128, 70>}, {pipeline_mode = #tpu.pipeline_mode<synchronous>, transform_indices = @transform_6, window_bounds = array<i64: 1, 70>}, {pipeline_mode = #tpu.pipeline_mode<synchronous>, transform_indices = @transform_7, window_bounds = array<i64: 1, 6>}, {transform_indices = @transform_8, window_bounds = array<i64: 8, 128>}, {transform_indices = @transform_9, window_bounds = array<i64: 8, 128>}]} {
    %c8_i32 = arith.constant 8 : i32
    %0 = arith.muli %arg0, %c8_i32 : i32
    %c0_i32 = arith.constant 0 : i32
    %c8_i32_0 = arith.constant 8 : i32
    %1 = arith.addi %c0_i32, %c8_i32_0 : i32
    %c1_i32 = arith.constant 1 : i32
    scf.for %arg14 = %c0_i32 to %1 step %c1_i32  : i32 {
      %c1_i32_38 = arith.constant 1 : i32
      %69 = arith.muli %arg14, %c1_i32_38 : i32
      %c0_i32_39 = arith.constant 0 : i32
      %70 = arith.addi %c0_i32_39, %69 : i32
      %71 = arith.addi %0, %70 : i32
      %c7_i32 = arith.constant 7 : i32
      %72 = arith.minsi %71, %c7_i32 : i32
      %73 = arith.index_cast %72 : i32 to index
      %74 = memref.load %arg1[%73] : memref<8xi32, #tpu.memory_space<smem>>
      %c0_i32_40 = arith.constant 0 : i32
      %75 = tpu.memref_slice %arg2[%72, %74, %c0_i32_40] : memref<8x16x128xf32, #tpu.memory_space<any>> -> memref<1x1x128xf32, #tpu.memory_space<any>>
      %76 = tpu.memref_squeeze %75 : memref<1x1x128xf32, #tpu.memory_space<any>> -> memref<1x128xf32, #tpu.memory_space<any>>
      %c0_i32_41 = arith.constant 0 : i32
      %77 = tpu.memref_slice %arg12[%70, %c0_i32_41] : memref<8x128xf32, #tpu.memory_space<vmem>> -> memref<1x128xf32, #tpu.memory_space<vmem>>
      tpu.enqueue_dma source(%76 : memref<1x128xf32, #tpu.memory_space<any>>) target(%77 : memref<1x128xf32, #tpu.memory_space<vmem>>) target_semaphore(%arg13 : memref<!tpu.dma_semaphore, #tpu.memory_space<semaphore_mem>>)
    }
    %c8_i32_1 = arith.constant 8 : i32
    %c0_i32_2 = arith.constant 0 : i32
    %c8_i32_3 = arith.constant 8 : i32
    %2 = arith.addi %c0_i32_2, %c8_i32_3 : i32
    %c1_i32_4 = arith.constant 1 : i32
    scf.for %arg14 = %c0_i32_2 to %2 step %c1_i32_4  : i32 {
      %c0_i32_38 = arith.constant 0 : i32
      %c0_i32_39 = arith.constant 0 : i32
      %c0_i32_40 = arith.constant 0 : i32
      %69 = tpu.memref_slice %arg2[%c0_i32_38, %c0_i32_39, %c0_i32_40] : memref<8x16x128xf32, #tpu.memory_space<any>> -> memref<1x1x128xf32, #tpu.memory_space<any>>
      %70 = tpu.memref_squeeze %69 : memref<1x1x128xf32, #tpu.memory_space<any>> -> memref<1x128xf32, #tpu.memory_space<any>>
      %c0_i32_41 = arith.constant 0 : i32
      %c0_i32_42 = arith.constant 0 : i32
      %71 = tpu.memref_slice %arg12[%c0_i32_41, %c0_i32_42] : memref<8x128xf32, #tpu.memory_space<vmem>> -> memref<1x128xf32, #tpu.memory_space<vmem>>
      tpu.wait_dma2 semaphore(%arg13 : memref<!tpu.dma_semaphore, #tpu.memory_space<semaphore_mem>>) src(%70 : memref<1x128xf32, #tpu.memory_space<any>>) dst(%71 : memref<1x128xf32, #tpu.memory_space<vmem>>)
    }
    %c0 = arith.constant 0 : index
    %c0_5 = arith.constant 0 : index
    %3 = vector.load %arg12[%c0, %c0_5] : memref<8x128xf32, #tpu.memory_space<vmem>>, vector<8x128xf32>
    %c0_6 = arith.constant 0 : index
    %c0_7 = arith.constant 0 : index
    %4 = vector.load %arg11[%c0_6, %c0_7] : memref<8x128xf32, #tpu.memory_space<vmem>>, vector<8x128xf32>
    tpu.vector_store %arg11[%c0_6, %c0_7], %3 {strides = array<i32>} : memref<8x128xf32, #tpu.memory_space<vmem>>, vector<8x128xf32>,
    %5 = arith.truncf %3 : vector<8x128xf32> to vector<8x128xbf16>
    %c0_8 = arith.constant 0 : index
    %c0_9 = arith.constant 0 : index
    %6 = vector.load %arg3[%c0_8, %c0_9] : memref<128x136xbf16, #tpu.memory_space<vmem>>, vector<128x136xbf16>
    %cst = arith.constant dense<0.000000e+00> : vector<8x136xf32>
    %7 = tpu.matmul %5, %6, %cst {dimension_numbers = #tpu.dot_dimension_numbers<[1], [0], [0], [1], [0, 0, 1, 1], [], []>} : vector<8x128xbf16>, vector<128x136xbf16>, vector<8x136xf32> -> vector<8x136xf32>
    %c0_10 = arith.constant 0 : index
    %c0_11 = arith.constant 0 : index
    %8 = vector.load %arg4[%c0_10, %c0_11] : memref<1x136xf32, #tpu.memory_space<vmem>>, vector<1x136xf32>
    %9 = vector.broadcast %8 : vector<1x136xf32> to vector<8x136xf32>
    %10 = arith.addf %7, %9 : vector<8x136xf32>
    %11 = vector.extract_strided_slice %10 {offsets = [0, 0], sizes = [8, 128], strides = [1, 1]} : vector<8x136xf32> to vector<8x128xf32>
    %12 = vector.extract_strided_slice %10 {offsets = [0, 128], sizes = [8, 8], strides = [1, 1]} : vector<8x136xf32> to vector<8x8xf32>
    %cst_12 = arith.constant dense<0.000000e+00> : vector<8xf32>
    %13 = vector.multi_reduction <add>, %11, %cst_12 [1] : vector<8x128xf32> to vector<8xf32>
    %14 = vector.shape_cast %13 : vector<8xf32> to vector<8x1xf32>
    %cst_13 = arith.constant 1.280000e+02 : f32
    %15 = vector.broadcast %cst_13 : f32 to vector<8x1xf32>
    %16 = arith.divf %14, %15 : vector<8x1xf32>
    %17 = arith.mulf %11, %11 : vector<8x128xf32>
    %cst_14 = arith.constant dense<0.000000e+00> : vector<8xf32>
    %18 = vector.multi_reduction <add>, %17, %cst_14 [1] : vector<8x128xf32> to vector<8xf32>
    %19 = vector.shape_cast %18 : vector<8xf32> to vector<8x1xf32>
    %cst_15 = arith.constant 1.280000e+02 : f32
    %20 = vector.broadcast %cst_15 : f32 to vector<8x1xf32>
    %21 = arith.divf %19, %20 : vector<8x1xf32>
    %22 = arith.mulf %16, %16 : vector<8x1xf32>
    %23 = arith.subf %21, %22 : vector<8x1xf32>
    %cst_16 = arith.constant 0.000000e+00 : f32
    %24 = vector.broadcast %cst_16 : f32 to vector<8x1xf32>
    %25 = arith.maximumf %23, %24 : vector<8x1xf32>
    %26 = vector.broadcast %16 : vector<8x1xf32> to vector<8x128xf32>
    %27 = arith.subf %11, %26 : vector<8x128xf32>
    %cst_17 = arith.constant 9.99999974E-6 : f32
    %28 = vector.broadcast %cst_17 : f32 to vector<8x1xf32>
    %29 = arith.addf %25, %28 : vector<8x1xf32>
    %30 = math.rsqrt %29 : vector<8x1xf32>
    %31 = vector.broadcast %30 : vector<8x1xf32> to vector<8x128xf32>
    %32 = arith.mulf %27, %31 : vector<8x128xf32>
    %c0_18 = arith.constant 0 : index
    %c0_19 = arith.constant 0 : index
    %33 = vector.load %arg5[%c0_18, %c0_19] : memref<1x128xf32, #tpu.memory_space<vmem>>, vector<1x128xf32>
    %34 = vector.broadcast %33 : vector<1x128xf32> to vector<8x128xf32>
    %35 = arith.mulf %32, %34 : vector<8x128xf32>
    %c0_20 = arith.constant 0 : index
    %c0_21 = arith.constant 0 : index
    %36 = vector.load %arg6[%c0_20, %c0_21] : memref<1x128xf32, #tpu.memory_space<vmem>>, vector<1x128xf32>
    %37 = vector.broadcast %36 : vector<1x128xf32> to vector<8x128xf32>
    %38 = arith.addf %35, %37 : vector<8x128xf32>
    %cst_22 = arith.constant 0.000000e+00 : f32
    %39 = vector.broadcast %cst_22 : f32 to vector<8x128xf32>
    %40 = arith.maximumf %38, %39 : vector<8x128xf32>
    %41 = arith.truncf %40 : vector<8x128xf32> to vector<8x128xbf16>
    %c0_23 = arith.constant 0 : index
    %c0_24 = arith.constant 0 : index
    %42 = vector.load %arg7[%c0_23, %c0_24] : memref<128x70xbf16, #tpu.memory_space<vmem>>, vector<128x70xbf16>
    %cst_25 = arith.constant dense<0.000000e+00> : vector<8x70xf32>
    %43 = tpu.matmul %41, %42, %cst_25 {dimension_numbers = #tpu.dot_dimension_numbers<[1], [0], [0], [1], [0, 0, 1, 1], [], []>} : vector<8x128xbf16>, vector<128x70xbf16>, vector<8x70xf32> -> vector<8x70xf32>
    %c0_26 = arith.constant 0 : index
    %c0_27 = arith.constant 0 : index
    %44 = vector.load %arg8[%c0_26, %c0_27] : memref<1x70xf32, #tpu.memory_space<vmem>>, vector<1x70xf32>
    %45 = vector.broadcast %44 : vector<1x70xf32> to vector<8x70xf32>
    %46 = arith.addf %43, %45 : vector<8x70xf32>
    %47 = vector.extract_strided_slice %46 {offsets = [0, 0], sizes = [8, 64], strides = [1, 1]} : vector<8x70xf32> to vector<8x64xf32>
    %48 = vector.extract_strided_slice %46 {offsets = [0, 64], sizes = [8, 6], strides = [1, 1]} : vector<8x70xf32> to vector<8x6xf32>
    %49 = arith.mulf %47, %47 : vector<8x64xf32>
    %cst_28 = arith.constant dense<0.000000e+00> : vector<8xf32>
    %50 = vector.multi_reduction <add>, %49, %cst_28 [1] : vector<8x64xf32> to vector<8xf32>
    %51 = vector.shape_cast %50 : vector<8xf32> to vector<8x1xf32>
    %c0_29 = arith.constant 0 : index
    %c0_30 = arith.constant 0 : index
    %52 = vector.load %arg9[%c0_29, %c0_30] : memref<1x6xf32, #tpu.memory_space<vmem>>, vector<1x6xf32>
    %53 = vector.broadcast %51 : vector<8x1xf32> to vector<8x6xf32>
    %54 = vector.broadcast %52 : vector<1x6xf32> to vector<8x6xf32>
    %55 = arith.mulf %53, %54 : vector<8x6xf32>
    %cst_31 = arith.constant 1.000000e-16 : f32
    %56 = vector.broadcast %cst_31 : f32 to vector<8x6xf32>
    %57 = arith.maximumf %55, %56 : vector<8x6xf32>
    %58 = math.rsqrt %57 : vector<8x6xf32>
    %59 = arith.mulf %48, %58 : vector<8x6xf32>
    %cst_32 = arith.constant 1.000000e+00 : f32
    %60 = vector.broadcast %cst_32 : f32 to vector<8x6xf32>
    %61 = arith.addf %60, %59 : vector<8x6xf32>
    %cst_33 = arith.constant 5.000000e-01 : f32
    %62 = vector.broadcast %cst_33 : f32 to vector<8x6xf32>
    %63 = arith.mulf %61, %62 : vector<8x6xf32>
    %cst_34 = arith.constant 9.99999993E-9 : f32
    %64 = vector.broadcast %cst_34 : f32 to vector<8x6xf32>
    %65 = arith.addf %63, %64 : vector<8x6xf32>
    %cst_35 = arith.constant 0.000000e+00 : f32
    %66 = vector.broadcast %cst_35 : f32 to vector<8x50xf32>
    %67 = tpu.concatenate %47, %12, %65, %66 in 1 : vector<8x64xf32>, vector<8x8xf32>, vector<8x6xf32>, vector<8x50xf32> -> vector<8x128xf32>
    %c0_36 = arith.constant 0 : index
    %c0_37 = arith.constant 0 : index
    %68 = vector.load %arg10[%c0_36, %c0_37] : memref<8x128xf32, #tpu.memory_space<vmem>>, vector<8x128xf32>
    tpu.vector_store %arg10[%c0_36, %c0_37], %67 {strides = array<i32>} : memref<8x128xf32, #tpu.memory_space<vmem>>, vector<8x128xf32>,
    return
  }
  func.func @transform_1(%arg0: i32, %arg1: memref<8xi32, #tpu.memory_space<smem>>) -> (i32, i32) {
    %c0_i32 = arith.constant 0 : i32
    %c0_i32_0 = arith.constant 0 : i32
    %c0_i32_1 = arith.constant 0 : i32
    return %c0_i32, %c0_i32_0 : i32, i32
  }
  func.func @transform_2(%arg0: i32, %arg1: memref<8xi32, #tpu.memory_space<smem>>) -> (i32, i32) {
    %c0_i32 = arith.constant 0 : i32
    %c0_i32_0 = arith.constant 0 : i32
    %c0_i32_1 = arith.constant 0 : i32
    return %c0_i32, %c0_i32_0 : i32, i32
  }
  func.func @transform_3(%arg0: i32, %arg1: memref<8xi32, #tpu.memory_space<smem>>) -> (i32, i32) {
    %c0_i32 = arith.constant 0 : i32
    %c0_i32_0 = arith.constant 0 : i32
    %c0_i32_1 = arith.constant 0 : i32
    return %c0_i32, %c0_i32_0 : i32, i32
  }
  func.func @transform_4(%arg0: i32, %arg1: memref<8xi32, #tpu.memory_space<smem>>) -> (i32, i32) {
    %c0_i32 = arith.constant 0 : i32
    %c0_i32_0 = arith.constant 0 : i32
    %c0_i32_1 = arith.constant 0 : i32
    return %c0_i32, %c0_i32_0 : i32, i32
  }
  func.func @transform_5(%arg0: i32, %arg1: memref<8xi32, #tpu.memory_space<smem>>) -> (i32, i32) {
    %c0_i32 = arith.constant 0 : i32
    %c0_i32_0 = arith.constant 0 : i32
    %c0_i32_1 = arith.constant 0 : i32
    return %c0_i32, %c0_i32_0 : i32, i32
  }
  func.func @transform_6(%arg0: i32, %arg1: memref<8xi32, #tpu.memory_space<smem>>) -> (i32, i32) {
    %c0_i32 = arith.constant 0 : i32
    %c0_i32_0 = arith.constant 0 : i32
    %c0_i32_1 = arith.constant 0 : i32
    return %c0_i32, %c0_i32_0 : i32, i32
  }
  func.func @transform_7(%arg0: i32, %arg1: memref<8xi32, #tpu.memory_space<smem>>) -> (i32, i32) {
    %c0_i32 = arith.constant 0 : i32
    %c0_i32_0 = arith.constant 0 : i32
    %c0_i32_1 = arith.constant 0 : i32
    return %c0_i32, %c0_i32_0 : i32, i32
  }
  func.func @transform_8(%arg0: i32, %arg1: memref<8xi32, #tpu.memory_space<smem>>) -> (i32, i32) {
    %c0_i32 = arith.constant 0 : i32
    %c0_i32_0 = arith.constant 0 : i32
    return %arg0, %c0_i32 : i32, i32
  }
  func.func @transform_9(%arg0: i32, %arg1: memref<8xi32, #tpu.memory_space<smem>>) -> (i32, i32) {
    %c0_i32 = arith.constant 0 : i32
    %c0_i32_0 = arith.constant 0 : i32
    return %arg0, %c0_i32 : i32, i32
  }
}

</mosaic_0001>

<llo_original>
// kernel: tpu_custom_call.1
$region0: #{tpu_custom_call.1}
  #allocation0 [shape = 'u32[]', space=smem, size = 0x4, offset = 0x4, fixed_abs, tag = 'smem constant byte address 0x4 - core index']
  #allocation1 [shape = 'u32[144,128]{1,0:T(1,128)}', space=vmem, size = 0x12000, scoped, tag = 'internal scratch']
  #allocation2 [shape = 'f32[8,128]{1,0:T(8,128)}', space=vmem, size = 0x1000, scoped, tag = 'scratch operand']
  #allocation3 [shape = 's32[1]{0}', space=sflag, size = 0x4, scoped, tag = 'scratch operand']
  #allocation4 [shape = 's32[1]{0}', space=sflag, size = 0x4, scoped, tag = 'scoped memory for tpu_custom_call.1']
  #allocation5 [shape = 'u8[512]{0}', space=smem, size = 0x200, scoped, tag = 'prefetched SMEM operand 0']
  #allocation10 [shape = 's32[]', space=sflag, size = 0x4, offset = 0, fixed_abs, tag = 'sflag constant byte address 0x0 - dummy sync flag']
  %s0 = inlined_call_operand.vmem [shape: s32[8], index: 0, kind: input, shape index: {}]
  %s1 = inlined_call_operand.vmem [shape: f32[8,16,128], index: 1, kind: input, shape index: {}]
  %s2 = inlined_call_operand.vmem [shape: bf16[128,136], index: 2, kind: input, shape index: {}]
  %s3 = inlined_call_operand.vmem [shape: f32[1,136], index: 3, kind: input, shape index: {}]
  %s4 = inlined_call_operand.vmem [shape: f32[1,128], index: 4, kind: input, shape index: {}]
  %s5 = inlined_call_operand.vmem [shape: f32[1,128], index: 5, kind: input, shape index: {}]
  %s6 = inlined_call_operand.vmem [shape: bf16[128,70], index: 6, kind: input, shape index: {}]
  %s7 = inlined_call_operand.vmem [shape: f32[1,70], index: 7, kind: input, shape index: {}]
  %s8 = inlined_call_operand.vmem [shape: f32[1,6], index: 8, kind: input, shape index: {}]
  %s9 = inlined_call_operand.hbm [shape: f32[8,128], index: 9, kind: output, shape index: {0}]
  %s10 = inlined_call_operand.hbm [shape: f32[8,128], index: 10, kind: output, shape index: {1}]
  %11 = xla_tuple %s9, %s10
  %s12 = sld [smem:[#allocation0]]
  $region90: #{tpu_custom_call.1} parent=0
    _
  %s14 = ssub.s32 1, %s12
  %s15 = scalar_select 0, %s14, %s12
  %s16 = sshll.u32 %s0, 4
  %s17 = int_to_ptr.vmem [resolvable:$true] %s16
  %19 = dma.vmem_to_smem %s17, 16, [#allocation5], [#allocation4]
  %20 = dma.done [#allocation4], 16
  %21 = sfence
  $region1: #{tpu_custom_call.1} parent=0
    #allocation6 [shape = 'u8[4096]{0}', space=vmem, size = 0x1000, scoped, tag = 'output window, operand 0, single buffered']
    #allocation7 [shape = 's32[1]{0}', space=sflag, size = 0x4, scoped, tag = 'scoped memory for tpu_custom_call.1']
    #allocation8 [shape = 'u8[4096]{0}', space=vmem, size = 0x1000, scoped, tag = 'output window, operand 1, single buffered']
    #allocation9 [shape = 's32[1]{0}', space=sflag, size = 0x4, scoped, tag = 'scoped memory for tpu_custom_call.1']
    %22 = vsyncpa [#allocation7], 0
    %23 = vsyncpa [#allocation9], 0
    // Predicated region
    $region2: #{tpu_custom_call.1} parent=1 // pred_check
      _
    $region3: #{tpu_custom_call.1} parent=1 // pred_check_branch
      %25 = sbr.rel (0) target = $region5
    $region4: #{tpu_custom_call.1} parent=1 // pred_region
      _
    $region5: #{tpu_custom_call.1} parent=1 // pred_fallthru
      _
    // Predicated region
    $region6: #{tpu_custom_call.1} parent=1 // pred_check
      _
    $region7: #{tpu_custom_call.1} parent=1 // pred_check_branch
      %27 = sbr.rel (0) target = $region9
    $region8: #{tpu_custom_call.1} parent=1 // pred_region
      _
    $region9: #{tpu_custom_call.1} parent=1 // pred_fallthru
      _
    // Predicated region
    $region10: #{tpu_custom_call.1} parent=1 // pred_check
      _
    $region11: #{tpu_custom_call.1} parent=1 // pred_check_branch
      %29 = sbr.rel (0) target = $region13
    $region12: #{tpu_custom_call.1} parent=1 // pred_region
      _
    $region13: #{tpu_custom_call.1} parent=1 // pred_fallthru
      _
    // Predicated region
    $region14: #{tpu_custom_call.1} parent=1 // pred_check
      _
    $region15: #{tpu_custom_call.1} parent=1 // pred_check_branch
      %31 = sbr.rel (0) target = $region17
    $region16: #{tpu_custom_call.1} parent=1 // pred_region
      _
    $region17: #{tpu_custom_call.1} parent=1 // pred_fallthru
      _
    // Predicated region
    $region18: #{tpu_custom_call.1} parent=1 // pred_check
      _
    $region19: #{tpu_custom_call.1} parent=1 // pred_check_branch
      %33 = sbr.rel (0) target = $region21
    $region20: #{tpu_custom_call.1} parent=1 // pred_region
      _
    $region21: #{tpu_custom_call.1} parent=1 // pred_fallthru
      _
    // Predicated region
    $region22: #{tpu_custom_call.1} parent=1 // pred_check
      _
    $region23: #{tpu_custom_call.1} parent=1 // pred_check_branch
      %35 = sbr.rel (0) target = $region25
    $region24: #{tpu_custom_call.1} parent=1 // pred_region
      _
    $region25: #{tpu_custom_call.1} parent=1 // pred_fallthru
      _
    // Predicated region
    $region26: #{tpu_custom_call.1} parent=1 // pred_check
      _
    $region27: #{tpu_custom_call.1} parent=1 // pred_check_branch
      %37 = sbr.rel (0) target = $region29
    $region28: #{tpu_custom_call.1} parent=1 // pred_region
      _
    $region29: #{tpu_custom_call.1} parent=1 // pred_fallthru
      _
    %s39 = smul.u32 0, 8
    loop: start=0, step=1, limit=8
    $region30: #{tpu_custom_call.1} parent=1 // loop_pre_header
      _
    $region31: #{tpu_custom_call.1} parent=1 // loop_header
      %s41 = sphi 0, %s45
      %p42 = scmp.ge.s32.totalorder %s41, 8
    $region32: #{tpu_custom_call.1} parent=1 // loop_header_branch
      %44 = sbr.rel (%p42) target = $region36
    $region33: #{tpu_custom_call.1} parent=1 // loop_body
      %s46 = sadd.s32 %s39, %s41
      %p47 = scmp.lt.s32.totalorder %s46, 7
      %s48 = scalar_select %p47, %s46, 7
      %s49 = sld [smem:[#allocation5 + %s48]]
      %s50 = smul.u32 %s48, 16
      %s51 = sadd.s32 %s49, %s50
      %s52 = scalar_lea.vmem %s1, %s51
      %s53 = scalar_lea.vmem [#allocation2], %s41
      %p55 = scmp.lt.u32.totalorder 1, 8
      %p56 = pneg %p55
      // Predicated region
      $region37: #{tpu_custom_call.1} parent=33 // pred_check
        _
      $region38: #{tpu_custom_call.1} parent=33 // pred_check_branch
        %58 = sbr.rel (%p55) target = $region40
      $region39: #{tpu_custom_call.1} parent=33 // pred_region
        %s73 = sand.u32 1, 7
        %p74 = scmp.eq.s32.totalorder %s73, 0
        %p75 = pneg %p74
        // Predicated region
        $region52: #{tpu_custom_call.1} parent=39 // pred_check
          _
        $region53: #{tpu_custom_call.1} parent=39 // pred_check_branch
          %77 = sbr.rel (%p74) target = $region55
        $region54: #{tpu_custom_call.1} parent=39 // pred_region
          %s78 = sand.u32 1, 7
          %s79 = ssub.s32 1, %s78
          %s80 = scalar_lea.vmem %s52, %s79
          %s81 = ssub.s32 1, %s78
          %s82 = scalar_lea.vmem %s53, %s81 [#allocation2]
          %s83 = sshllo.u32 0, %s78
          loop: start=0, step=1, limit=1
          $region56: #{tpu_custom_call.1} parent=54 // loop_pre_header
            _
          $region57: #{tpu_custom_call.1} parent=54 // loop_header
            %s85 = sphi 0, %s89
            %p86 = scmp.ge.s32.totalorder %s85, 1
            %s90 = sphi %s80, %s80
            %s91 = sphi %s82, %s82
          $region58: #{tpu_custom_call.1} parent=54 // loop_header_branch
            %88 = sbr.rel (%p86) target = $region62
          $region59: #{tpu_custom_call.1} parent=54 // loop_body
            %v92 = vld [vmem:[%s90] sm:%s83]
            %93 = vst [vmem:[%s91] sm:%s83] %v92
          $region60: #{tpu_custom_call.1} parent=54 // loop_footer
            %s89 = sadd.s32 1, %s85
          $region61: #{tpu_custom_call.1} parent=54 // loop_footer_branch
            %84 = sbr.rel target = $region57
          $region62: #{tpu_custom_call.1} parent=54 // loop_exit
            _
        $region55: #{tpu_custom_call.1} parent=39 // pred_fallthru
          _
      $region40: #{tpu_custom_call.1} parent=33 // pred_fallthru
        _
      // Predicated region
      $region41: #{tpu_custom_call.1} parent=33 // pred_check
        %p59 = pneg %p55
      $region42: #{tpu_custom_call.1} parent=33 // pred_check_branch
        %61 = sbr.rel (%p59) target = $region44
      $region43: #{tpu_custom_call.1} parent=33 // pred_region
        %s62 = sshllo.u32 0, 1
        loop: start=0, step=1, limit=1
        $region45: #{tpu_custom_call.1} parent=43 // loop_pre_header
          _
        $region46: #{tpu_custom_call.1} parent=43 // loop_header
          %s64 = sphi 0, %s68
          %p65 = scmp.ge.s32.totalorder %s64, 1
          %s69 = sphi %s52, %s52
          %s70 = sphi %s53, %s53
        $region47: #{tpu_custom_call.1} parent=43 // loop_header_branch
          %67 = sbr.rel (%p65) target = $region51
        $region48: #{tpu_custom_call.1} parent=43 // loop_body
          %v71 = vld [vmem:[%s69] sm:%s62]
          %72 = vst [vmem:[%s70] sm:%s62] %v71
        $region49: #{tpu_custom_call.1} parent=43 // loop_footer
          %s68 = sadd.s32 1, %s64
        $region50: #{tpu_custom_call.1} parent=43 // loop_footer_branch
          %63 = sbr.rel target = $region46
        $region51: #{tpu_custom_call.1} parent=43 // loop_exit
          _
      $region44: #{tpu_custom_call.1} parent=33 // pred_fallthru
        _
      // Predicated region
      $region63: #{tpu_custom_call.1} parent=33 // pred_check
        _
      $region64: #{tpu_custom_call.1} parent=33 // pred_check_branch
        %96 = sbr.rel (0) target = $region66
      $region65: #{tpu_custom_call.1} parent=33 // pred_region
        %97 = vsyncadd [#allocation3], 16
      $region66: #{tpu_custom_call.1} parent=33 // pred_fallthru
        _
    $region34: #{tpu_custom_call.1} parent=1 // loop_footer
      %s45 = sadd.s32 1, %s41
    $region35: #{tpu_custom_call.1} parent=1 // loop_footer_branch
      %40 = sbr.rel target = $region31
    $region36: #{tpu_custom_call.1} parent=1 // loop_exit
      _
    loop: start=0, step=1, limit=8
    $region67: #{tpu_custom_call.1} parent=1 // loop_pre_header
      _
    $region68: #{tpu_custom_call.1} parent=1 // loop_header
      %s99 = sphi 0, %s103
      %p100 = scmp.ge.s32.totalorder %s99, 8
    $region69: #{tpu_custom_call.1} parent=1 // loop_header_branch
      %102 = sbr.rel (%p100) target = $region73
    $region70: #{tpu_custom_call.1} parent=1 // loop_body
      %s104 = smul.u32 1, 1
      %s105 = sshll.u32 %s104, 4
      %106 = dma.done [#allocation3], %s105
    $region71: #{tpu_custom_call.1} parent=1 // loop_footer
      %s103 = sadd.s32 1, %s99
    $region72: #{tpu_custom_call.1} parent=1 // loop_footer_branch
      %98 = sbr.rel target = $region68
    $region73: #{tpu_custom_call.1} parent=1 // loop_exit
      _
    %v107 = vld [vmem:[#allocation2] sm:$0xff]
    %108 = vst [vmem:[#allocation8] sm:$0xff] %v107
    %v109 = vpack.c.bf16 %v107, %v107
    %v110 = vld [vmem:[%s2] sm:$0xff]
    %v111 = vld [vmem:[%s2 + $0x8] sm:$0xff]
    %v112 = vld [vmem:[%s2 + $0x10] sm:$0xff]
    %v113 = vld [vmem:[%s2 + $0x18] sm:$0xff]
    %v114 = vld [vmem:[%s2 + $0x20] sm:$0xff]
    %v115 = vld [vmem:[%s2 + $0x28] sm:$0xff]
    %v116 = vld [vmem:[%s2 + $0x30] sm:$0xff]
    %v117 = vld [vmem:[%s2 + $0x38] sm:$0xff]
    %v118 = vld [vmem:[%s2 + $0x40] sm:$0xff]
    %v119 = vld [vmem:[%s2 + $0x48] sm:$0xff]
    %v120 = vld [vmem:[%s2 + $0x50] sm:$0xff]
    %v121 = vld [vmem:[%s2 + $0x58] sm:$0xff]
    %v122 = vld [vmem:[%s2 + $0x60] sm:$0xff]
    %v123 = vld [vmem:[%s2 + $0x68] sm:$0xff]
    %v124 = vld [vmem:[%s2 + $0x70] sm:$0xff]
    %v125 = vld [vmem:[%s2 + $0x78] sm:$0xff]
    %v126 = vld [vmem:[%s3] sm:$0x3]
    %v128 = vlaneseq
    %v129 = vshrl.u32 %v128, 7
    %v130 = vsub.s32 0, %v129
    %v131 = vrot.slane %v126, %v130
    %v132 = vlaneseq
    %v133 = vshrl.u32 %v132, 7
    %v134 = vsub.s32 1, %v133
    %v135 = vrot.slane %v126, %v134
    %v154 = vunpack.c.l.b16 %v110
    %v155 = vunpack.c.h.b16 %v110
    %v156 = vunpack.c.l.b16 %v111
    %v157 = vunpack.c.h.b16 %v111
    %v158 = vunpack.c.l.b16 %v112
    %v159 = vunpack.c.h.b16 %v112
    %v160 = vunpack.c.l.b16 %v113
    %v161 = vunpack.c.h.b16 %v113
    %v162 = vunpack.c.l.b16 %v114
    %v163 = vunpack.c.h.b16 %v114
    %v164 = vunpack.c.l.b16 %v115
    %v165 = vunpack.c.h.b16 %v115
    %v166 = vunpack.c.l.b16 %v116
    %v167 = vunpack.c.h.b16 %v116
    %v168 = vunpack.c.l.b16 %v117
    %v169 = vunpack.c.h.b16 %v117
    %v170 = vunpack.c.l.b16 %v118
    %v171 = vunpack.c.h.b16 %v118
    %v172 = vunpack.c.l.b16 %v119
    %v173 = vunpack.c.h.b16 %v119
    %v174 = vunpack.c.l.b16 %v120
    %v175 = vunpack.c.h.b16 %v120
    %v176 = vunpack.c.l.b16 %v121
    %v177 = vunpack.c.h.b16 %v121
    %v178 = vunpack.c.l.b16 %v122
    %v179 = vunpack.c.h.b16 %v122
    %v180 = vunpack.c.l.b16 %v123
    %v181 = vunpack.c.h.b16 %v123
    %v182 = vunpack.c.l.b16 %v124
    %v183 = vunpack.c.h.b16 %v124
    %v184 = vunpack.c.l.b16 %v125
    %v185 = vunpack.c.h.b16 %v125
    %v186 = vpack.c.b16 %v156, %v154
    %v187 = vpack.c.b16 %v157, %v155
    %v188 = vpack.c.b16 %v160, %v158
    %v189 = vpack.c.b16 %v161, %v159
    %v190 = vpack.c.b16 %v164, %v162
    %v191 = vpack.c.b16 %v165, %v163
    %v192 = vpack.c.b16 %v168, %v166
    %v193 = vpack.c.b16 %v169, %v167
    %v194 = vpack.c.b16 %v172, %v170
    %v195 = vpack.c.b16 %v173, %v171
    %v196 = vpack.c.b16 %v176, %v174
    %v197 = vpack.c.b16 %v177, %v175
    %v198 = vpack.c.b16 %v180, %v178
    %v199 = vpack.c.b16 %v181, %v179
    %v200 = vpack.c.b16 %v184, %v182
    %v201 = vpack.c.b16 %v185, %v183
    %218 = vmatprep.subr.bf16.mxu0 %v187
    %219 = vmatpush1.bf16.msra.mxu0 %v186
    %220 = vmatprep.subr.bf16.mxu0 %v189
    %221 = vmatpush1.bf16.msra.mxu0 %v188
    %222 = vmatprep.subr.bf16.mxu0 %v191
    %223 = vmatpush1.bf16.msra.mxu0 %v190
    %224 = vmatprep.subr.bf16.mxu0 %v193
    %225 = vmatpush1.bf16.msra.mxu0 %v192
    %226 = vmatprep.subr.bf16.mxu0 %v195
    %227 = vmatpush1.bf16.msra.mxu0 %v194
    %228 = vmatprep.subr.bf16.mxu0 %v197
    %229 = vmatpush1.bf16.msra.mxu0 %v196
    %230 = vmatprep.subr.bf16.mxu0 %v199
    %231 = vmatpush1.bf16.msra.mxu0 %v198
    %232 = vmatprep.subr.bf16.mxu0 %v201
    %233 = vmatpush1.bf16.msra.mxu0 %v200
    %234 = vmatprep.subr.bf16.mxu0 0
    %235 = vmatpush1.bf16.msra.mxu0 0
    %236 = vmatprep.subr.bf16.mxu0 0
    %237 = vmatpush1.bf16.msra.mxu0 0
    %238 = vmatprep.subr.bf16.mxu0 0
    %239 = vmatpush1.bf16.msra.mxu0 0
    %240 = vmatprep.subr.bf16.mxu0 0
    %241 = vmatpush1.bf16.msra.mxu0 0
    %242 = vmatprep.subr.bf16.mxu0 0
    %243 = vmatpush1.bf16.msra.mxu0 0
    %244 = vmatprep.subr.bf16.mxu0 0
    %245 = vmatpush1.bf16.msra.mxu0 0
    %246 = vmatprep.subr.bf16.mxu0 0
    %247 = vmatpush1.bf16.msra.mxu0 0
    %248 = vmatprep.subr.bf16.mxu0 0
    %249 = vmatpush1.bf16.msra.mxu0 0
    %250 = vmatprep.mubr.bf16.mxu0 0
    %251 = vmatmul.mubr.bf16.gmra.mrb[0].mxu0 %v109
    %v252 = vpop.f32.mrb[0].mxu0
    %v253 = vadd.f32 %v131, %v252
    %v254 = vpop.f32.mrb[0].mxu0
    %v255 = vadd.f32 %v135, %v254
    %v256 = vpop.f32.mrb[0].mxu0
    %v257 = vpop.f32.mrb[0].mxu0
    %258 = vdwg.mxu0
    %259 = vadd.xlane.f32.xlu0 %v253
    %v260 = vpop.xlane.xlu0 %259
    %v261 = vrcp.pop 128.0
    %v262 = vmul.f32 %v260, %v261
    %v263 = vmul.f32 %v253, %v253
    %264 = vadd.xlane.f32.xlu0 %v263
    %v265 = vpop.xlane.xlu0 %264
    %v266 = vmul.f32 %v265, %v261
    %v267 = vmul.f32 %v262, %v262
    %v268 = vsub.f32 %v266, %v267
    %v269 = vmax.f32 %v268, 0.0
    %v270 = vsub.f32 %v253, %v262
    %v271 = vadd.f32 %v269, 1e-05
    %v272 = vrsqrt.pop %v271
    %v273 = vmul.f32 %v270, %v272
    %v274 = vld [vmem:[%s4] sm:$0x1]
    %v276 = vlaneseq
    %v277 = vshrl.u32 %v276, 7
    %v278 = vsub.s32 0, %v277
    %v279 = vrot.slane %v274, %v278
    %v281 = vmul.f32 %v273, %v279
    %v282 = vld [vmem:[%s5] sm:$0x1]
    %v284 = vlaneseq
    %v285 = vshrl.u32 %v284, 7
    %v286 = vsub.s32 0, %v285
    %v287 = vrot.slane %v282, %v286
    %v289 = vadd.f32 %v281, %v287
    %v290 = vmax.f32 %v289, 0.0
    %v291 = vpack.c.bf16 %v290, %v290
    %v292 = vld [vmem:[%s6] sm:$0xf]
    %v293 = vld [vmem:[%s6 + $0x4] sm:$0xf]
    %v294 = vld [vmem:[%s6 + $0x8] sm:$0xf]
    %v295 = vld [vmem:[%s6 + $0xc] sm:$0xf]
    %v296 = vld [vmem:[%s6 + $0x10] sm:$0xf]
    %v297 = vld [vmem:[%s6 + $0x14] sm:$0xf]
    %v298 = vld [vmem:[%s6 + $0x18] sm:$0xf]
    %v299 = vld [vmem:[%s6 + $0x1c] sm:$0xf]
    %v300 = vld [vmem:[%s6 + $0x20] sm:$0xf]
    %v301 = vld [vmem:[%s6 + $0x24] sm:$0xf]
    %v302 = vld [vmem:[%s6 + $0x28] sm:$0xf]
    %v303 = vld [vmem:[%s6 + $0x2c] sm:$0xf]
    %v304 = vld [vmem:[%s6 + $0x30] sm:$0xf]
    %v305 = vld [vmem:[%s6 + $0x34] sm:$0xf]
    %v306 = vld [vmem:[%s6 + $0x38] sm:$0xf]
    %v307 = vld [vmem:[%s6 + $0x3c] sm:$0xf]
    %v308 = vld [vmem:[%s7] sm:$0x1]
    %v310 = vlaneseq
    %v311 = vshrl.u32 %v310, 7
    %v312 = vsub.s32 0, %v311
    %v313 = vrot.slane %v308, %v312
    %v331 = vunpack.c.l.b16 %v292
    %v332 = vunpack.c.l.b16 %v293
    %v333 = vunpack.c.l.b16 %v294
    %v334 = vunpack.c.l.b16 %v295
    %v335 = vunpack.c.l.b16 %v296
    %v336 = vunpack.c.l.b16 %v297
    %v337 = vunpack.c.l.b16 %v298
    %v338 = vunpack.c.l.b16 %v299
    %v339 = vunpack.c.l.b16 %v300
    %v340 = vunpack.c.l.b16 %v301
    %v341 = vunpack.c.l.b16 %v302
    %v342 = vunpack.c.l.b16 %v303
    %v343 = vunpack.c.l.b16 %v304
    %v344 = vunpack.c.l.b16 %v305
    %v345 = vunpack.c.l.b16 %v306
    %v346 = vunpack.c.l.b16 %v307
    %v347 = vpack.c.b16 %v332, %v331
    %v348 = vpack.c.b16 %v334, %v333
    %v349 = vpack.c.b16 %v336, %v335
    %v350 = vpack.c.b16 %v338, %v337
    %v351 = vpack.c.b16 %v340, %v339
    %v352 = vpack.c.b16 %v342, %v341
    %v353 = vpack.c.b16 %v344, %v343
    %v354 = vpack.c.b16 %v346, %v345
    %363 = vmatprep.subr.bf16.mxu0 0
    %364 = vmatpush1.bf16.msra.mxu0 %v347
    %365 = vmatprep.subr.bf16.mxu0 0
    %366 = vmatpush1.bf16.msra.mxu0 %v348
    %367 = vmatprep.subr.bf16.mxu0 0
    %368 = vmatpush1.bf16.msra.mxu0 %v349
    %369 = vmatprep.subr.bf16.mxu0 0
    %370 = vmatpush1.bf16.msra.mxu0 %v350
    %371 = vmatprep.subr.bf16.mxu0 0
    %372 = vmatpush1.bf16.msra.mxu0 %v351
    %373 = vmatprep.subr.bf16.mxu0 0
    %374 = vmatpush1.bf16.msra.mxu0 %v352
    %375 = vmatprep.subr.bf16.mxu0 0
    %376 = vmatpush1.bf16.msra.mxu0 %v353
    %377 = vmatprep.subr.bf16.mxu0 0
    %378 = vmatpush1.bf16.msra.mxu0 %v354
    %379 = vmatprep.subr.bf16.mxu0 0
    %380 = vmatpush1.bf16.msra.mxu0 0
    %381 = vmatprep.subr.bf16.mxu0 0
    %382 = vmatpush1.bf16.msra.mxu0 0
    %383 = vmatprep.subr.bf16.mxu0 0
    %384 = vmatpush1.bf16.msra.mxu0 0
    %385 = vmatprep.subr.bf16.mxu0 0
    %386 = vmatpush1.bf16.msra.mxu0 0
    %387 = vmatprep.subr.bf16.mxu0 0
    %388 = vmatpush1.bf16.msra.mxu0 0
    %389 = vmatprep.subr.bf16.mxu0 0
    %390 = vmatpush1.bf16.msra.mxu0 0
    %391 = vmatprep.subr.bf16.mxu0 0
    %392 = vmatpush1.bf16.msra.mxu0 0
    %393 = vmatprep.subr.bf16.mxu0 0
    %394 = vmatpush1.bf16.msra.mxu0 0
    %395 = vmatprep.mubr.bf16.mxu0 0
    %396 = vmatmul.mubr.bf16.gmra.mrb[0].mxu0 %v291
    %v397 = vpop.f32.mrb[0].mxu0
    %v398 = vadd.f32 %v313, %v397
    %v399 = vpop.f32.mrb[0].mxu0
    %v400 = vpop.f32.mrb[0].mxu0
    %v401 = vpop.f32.mrb[0].mxu0
    %402 = vdwg.mxu0
    %v403 = vmul.f32 %v398, %v398
    %vm404 = vcmask 523264
    %v405 = vsel %vm404, %v403, 0.0
    %406 = vadd.xlane.f32.xlu0 %v405
    %v407 = vpop.xlane.xlu0 %406
    %v408 = vld [vmem:[%s8] sm:$0x1]
    %v410 = vlaneseq
    %v411 = vshrl.u32 %v410, 7
    %v412 = vsub.s32 0, %v411
    %v413 = vrot.slane %v408, %v412
    %v415 = vmul.f32 %v407, %v413
    %v416 = vmax.f32 %v415, 1e-16
    %v417 = vrsqrt.pop %v416
    %419 = vrot.lane.b32.xlu0 %v417, 64
    %v420 = vpop.permute.xlu0 %419
    %v422 = vmul.f32 %v398, %v420
    %v423 = vadd.f32 %v422, 1.0
    %v424 = vmul.f32 %v423, 0.5
    %v425 = vadd.f32 %v424, 1e-08
    %427 = vrot.lane.b32.xlu0 %v255, 64
    %v428 = vpop.permute.xlu0 %427
    %431 = vrot.lane.b32.xlu0 %v425, 8
    %v432 = vpop.permute.xlu0 %431
    %v434 = vsel %vm404, %v398, %v428
    %vm435 = vcmask 588800
    %v436 = vsel %vm435, %v434, %v432
    %vm437 = vcmask 637952
    %v438 = vsel %vm437, %v436, 0.0
    %439 = vst [vmem:[#allocation6] sm:$0xff] %v438
    // Predicated region
    $region74: #{tpu_custom_call.1} parent=1 // pred_check
      _
    $region75: #{tpu_custom_call.1} parent=1 // pred_check_branch
      %441 = sbr.rel (0) target = $region77
    $region76: #{tpu_custom_call.1} parent=1 // pred_region
      %s443 = ssub.s32 128, 128
      %444 = vsyncadd [#allocation7], %s443
      %s446 = sshll.u32 [#allocation6], 4
      %s447 = int_to_ptr.vmem [resolvable:$true] %s446
      %449 = dma.vmem_to_hbm [thread:$0]  %s447, 128, %s9, [#allocation7]
    $region77: #{tpu_custom_call.1} parent=1 // pred_fallthru
      _
    // Predicated region
    $region78: #{tpu_custom_call.1} parent=1 // pred_check
      _
    $region79: #{tpu_custom_call.1} parent=1 // pred_check_branch
      %451 = sbr.rel (0) target = $region81
    $region80: #{tpu_custom_call.1} parent=1 // pred_region
      %s453 = ssub.s32 128, 128
      %454 = vsyncadd [#allocation9], %s453
      %s456 = sshll.u32 [#allocation8], 4
      %s457 = int_to_ptr.vmem [resolvable:$true] %s456
      %459 = dma.vmem_to_hbm [thread:$0]  %s457, 128, %s10, [#allocation9]
    $region81: #{tpu_custom_call.1} parent=1 // pred_fallthru
      _
    // Predicated region
    $region82: #{tpu_custom_call.1} parent=1 // pred_check
      _
    $region83: #{tpu_custom_call.1} parent=1 // pred_check_branch
      %461 = sbr.rel (0) target = $region85
    $region84: #{tpu_custom_call.1} parent=1 // pred_region
      %462 = dma.done [#allocation7], 128
    $region85: #{tpu_custom_call.1} parent=1 // pred_fallthru
      _
    // Predicated region
    $region86: #{tpu_custom_call.1} parent=1 // pred_check
      _
    $region87: #{tpu_custom_call.1} parent=1 // pred_check_branch
      %464 = sbr.rel (0) target = $region89
    $region88: #{tpu_custom_call.1} parent=1 // pred_region
      %465 = dma.done [#allocation9], 128
    $region89: #{tpu_custom_call.1} parent=1 // pred_fallthru
      _
    %466 = vsyncpa [#allocation7], 1
    %467 = vsyncpa [#allocation9], 1
  %468 = vsyncmov [#allocation3]
  %s469 = vpop.sfrf %468
  %p470 = scmp.eq.s32.totalorder %s469, 0
  %p471 = pneg %p470
  %473 = shalt.err (%p471)

</llo_original>
